<compile_context>
chip_gen: v7x
topology: tpu7x:2x2x1
jax: 0.10.0
libtpu: 0.0.40
codegen_flags: <defaults>
</compile_context>

<pallas_src>
import jax
import jax.numpy as jnp
from jax.experimental import pallas as pl
from jax.experimental.pallas import tpu as pltpu

NUM_LABELS_PER_CATEGORY = [3, 3, 2, 3, 3, 3, 3]
TOTAL_LABELS = sum(NUM_LABELS_PER_CATEGORY)   # 20
N_PAD = 128                                   # lane-dense padded fused-head width


def _round_up(x, m):
    return ((x + m - 1) // m) * m


def _pad_k(in_features):
    # Lane-align the contraction dim only when padding is cheap relative to the
    # unpadded traffic; small IN stays unpadded (full-dim block is legal).
    if in_features >= 128 and in_features % 128 != 0:
        return _round_up(in_features, 128)
    return in_features


def _physical_vmem_bytes():
    try:
        return int(pltpu.get_tpu_info().vmem_capacity_bytes)
    except Exception:
        return 64 << 20   # conservative fallback (v7x per-TensorCore VMEM)


def _multitask_kernel(x_ref, wd_ref, bd_ref, wh_ref, bh_ref, out_ref):
    # x_ref:  [TB, IN]   features tile (cast in-kernel; f32 == torch x.float())
    # wd_ref: [IN, H]    dense weight (transposed vs torch)   -- VMEM-resident
    # bd_ref: [1, H]     dense bias (f32)
    # wh_ref: [H, 128]   fused + zero-padded head weights     -- VMEM-resident
    # bh_ref: [1, 128]   fused + zero-padded head biases (f32)
    # out_ref:[TB, 128]  padded concatenated logits (f32)
    x = x_ref[...].astype(wd_ref.dtype)
    h = jnp.tanh(
        jnp.dot(x, wd_ref[...], preferred_element_type=jnp.float32) + bd_ref[...]
    )
    out_ref[...] = (
        jnp.dot(h.astype(wh_ref.dtype), wh_ref[...],
                preferred_element_type=jnp.float32) + bh_ref[...]
    ).astype(out_ref.dtype)


def _choose_tile(B, IN_pad, H, x_itemsize, w_itemsize, budget):
    # Conservative: count weights double-buffered even if Buffered(1) lands.
    resident = 2 * (IN_pad * H + H * N_PAD) * w_itemsize + 2 * (H + N_PAD) * 4
    tb = 1024
    while tb > 8 and resident + 2 * tb * (IN_pad * x_itemsize + N_PAD * 4) > budget:
        tb //= 2
    tb = min(tb, _round_up(B, 8))
    if B > 8:
        # Keep >= 2 grid programs so the "parallel" batch axis can shard across
        # v7x's two TensorCores (neutral on single-TC v5e / v6e).
        tb = min(tb, _round_up(pl.cdiv(B, 2), 8))
    return max(tb, 8)


def _pallas_forward(x, wd, bd, wh, bh, tb, phys_vmem, single_buffer_weights):
    B, IN_pad = x.shape
    H = wd.shape[1]
    x_isz = jnp.dtype(x.dtype).itemsize
    w_isz = jnp.dtype(wd.dtype).itemsize

    resident_mode = (
        dict(pipeline_mode=pl.Buffered(1)) if single_buffer_weights else {}
    )
    w_bufs = 1 if single_buffer_weights else 2
    vmem_need = (
        w_bufs * (IN_pad * H + H * N_PAD) * w_isz     # resident weights
        + w_bufs * (H + N_PAD) * 4                    # resident biases (f32)
        + 2 * tb * (IN_pad * x_isz + N_PAD * 4)       # double-buffered x / out tiles
    )
    vmem_limit = int(min(0.9 * phys_vmem, max(4 << 20, 1.5 * vmem_need)))

    cost = pl.CostEstimate(
        flops=2 * B * (IN_pad * H + H * N_PAD),
        transcendentals=B * H,
        bytes_accessed=(B * IN_pad * x_isz
                        + (IN_pad * H + H * N_PAD) * w_isz
                        + B * N_PAD * 4),
    )

    return pl.pallas_call(
        _multitask_kernel,
        out_shape=jax.ShapeDtypeStruct((B, N_PAD), jnp.float32),
        grid_spec=pl.GridSpec(
            grid=(pl.cdiv(B, tb),),
            in_specs=[
                pl.BlockSpec((tb, IN_pad), lambda i: (i, 0)),                 # streamed
                pl.BlockSpec((IN_pad, H), lambda i: (0, 0), **resident_mode),  # resident
                pl.BlockSpec((1, H), lambda i: (0, 0), **resident_mode),       # resident
                pl.BlockSpec((H, N_PAD), lambda i: (0, 0), **resident_mode),   # resident
                pl.BlockSpec((1, N_PAD), lambda i: (0, 0), **resident_mode),   # resident
            ],
            out_specs=pl.BlockSpec((tb, N_PAD), lambda i: (i, 0)),
        ),
        compiler_params=pltpu.CompilerParams(
            dimension_semantics=("parallel",),   # megacore sharding on v7x
            vmem_limit_bytes=vmem_limit,
        ),
        cost_estimate=cost,
    )(x, wd, bd, wh, bh)


def prepare_params(params, compute_dtype=jnp.float32):
    """One-time param prep: fuse + zero-pad the 7 heads to a lane-dense 128-wide
    slab, lane-align the dense weight's contraction dim, and cast the matmul
    weights to compute_dtype (bf16 => native-MXU inputs with f32 accumulation)."""
    wd, bd, wh, bh = params["wd"], params["bd"], params["wh"], params["bh"]
    IN, _ = wd.shape
    IN_pad = _pad_k(IN)
    wd_p = jnp.pad(wd, ((0, IN_pad - IN), (0, 0))).astype(compute_dtype)
    wh_p = jnp.pad(wh, ((0, 0), (0, N_PAD - wh.shape[1]))).astype(compute_dtype)
    bh_p = jnp.pad(bh, ((0, 0), (0, N_PAD - bh.shape[1]))).astype(jnp.float32)
    return {"wd": wd_p, "bd": bd.astype(jnp.float32), "wh": wh_p, "bh": bh_p}


def multitask_forward(features, prepped, tb=None):
    """features: [B, input_size]; prepped: output of prepare_params.
    Returns list of 7 per-category float32 logits [B, n_i]."""
    wd, bd, wh, bh = prepped["wd"], prepped["bd"], prepped["wh"], prepped["bh"]
    B, IN = features.shape
    IN_pad, H = wd.shape
    if IN != IN_pad:
        features = jnp.pad(features, ((0, 0), (0, IN_pad - IN)))

    phys = _physical_vmem_bytes()
    if tb is None:
        tb = _choose_tile(B, IN_pad, H,
                          jnp.dtype(features.dtype).itemsize,
                          jnp.dtype(wd.dtype).itemsize,
                          budget=phys // 2)
    # TODO(synk): if IN_pad*H*itemsize alone outgrows ~phys//3, add an innermost
    #             "arbitrary" K-reduction grid axis with an f32 accumulator
    #             scratch (pl.when init/finalize) instead of shrinking tb.

    try:
        logits_pad = _pallas_forward(features, wd, bd, wh, bh, tb, phys,
                                     single_buffer_weights=True)
    except Exception:
        # pl.Buffered(1) not supported by this jax version -> default buffering.
        logits_pad = _pallas_forward(features, wd, bd, wh, bh, tb, phys,
                                     single_buffer_weights=False)

    # Slice the 7 heads straight out of the padded slab (no [:, :20] intermediate).
    out, off = [], 0
    for n in NUM_LABELS_PER_CATEGORY:
        out.append(logits_pad[:, off:off + n])
        off += n
    return out


def init_params(key, input_size, hidden_size):
    """Deterministic init mimicking nn.Linear's uniform(-1/sqrt(fan_in), 1/sqrt(fan_in))."""
    k = jax.random.split(key, 4)
    bound_d = 1.0 / (input_size ** 0.5)
    wd = jax.random.uniform(k[0], (input_size, hidden_size), jnp.float32,
                            minval=-bound_d, maxval=bound_d)
    bd = jax.random.uniform(k[1], (1, hidden_size), jnp.float32,
                            minval=-bound_d, maxval=bound_d)
    bound_h = 1.0 / (hidden_size ** 0.5)
    wh = jax.random.uniform(k[2], (hidden_size, TOTAL_LABELS), jnp.float32,
                            minval=-bound_h, maxval=bound_h)
    bh = jax.random.uniform(k[3], (1, TOTAL_LABELS), jnp.float32,
                            minval=-bound_h, maxval=bound_h)
    return {"wd": wd, "bd": bd, "wh": wh, "bh": bh}


def _reference_forward(features, params):
    x = features.astype(jnp.float32)
    h = jnp.tanh(x @ params["wd"] + params["bd"])
    cat = h @ params["wh"] + params["bh"]
    out, off = [], 0
    for n in NUM_LABELS_PER_CATEGORY:
        out.append(cat[:, off:off + n])
        off += n
    return out


if __name__ == "__main__":
    key = jax.random.PRNGKey(0)
    k_x, k_p = jax.random.split(key)

    batch = 24
    input_size = 32
    hidden_size = 32

    features = jax.random.normal(k_x, (batch, input_size), jnp.float32)
    params = init_params(k_p, input_size, hidden_size)
    ref = _reference_forward(features, params)

    # --- f32 path (faithful to torch's x.float() + f32 Linear semantics) -----
    prepped = prepare_params(params)                 # fuse/pad heads once
    logits = multitask_forward(features, prepped)    # auto tile -> 2-program grid
    logits = [jax.block_until_ready(l) for l in logits]
    for l, r, n in zip(logits, ref, NUM_LABELS_PER_CATEGORY):
        assert l.shape == (batch, n), l.shape
        assert jnp.allclose(l, r, atol=1e-5, rtol=1e-5), "f32 mismatch vs reference"

    # --- small explicit tile: exercises the streamed multi-step pipeline -----
    logits8 = multitask_forward(features, prepped, tb=8)
    for l, r in zip(logits8, ref):
        assert jnp.allclose(jax.block_until_ready(l), r, atol=1e-5, rtol=1e-5), \
            "tb=8 mismatch vs reference"

    # --- optional bf16-MXU path (f32 accumulation), looser tolerance ---------
    prepped_bf16 = prepare_params(params, compute_dtype=jnp.bfloat16)
    logits_bf16 = multitask_forward(features, prepped_bf16)
    for l, r in zip(logits_bf16, ref):
        assert jnp.allclose(jax.block_until_ready(l), r, atol=5e-2, rtol=5e-2), \
            "bf16 mismatch vs reference"

    print("KERNEL_OK")
</pallas_src>

<mosaic_0001>
module attributes {stable_mosaic.version = 11 : i64} {
  func.func @_multitask_kernel(%arg0: i32, %arg1: memref<16x32xf32, #tpu.memory_space<vmem>>, %arg2: memref<32x32xf32, #tpu.memory_space<vmem>>, %arg3: memref<1x32xf32, #tpu.memory_space<vmem>>, %arg4: memref<32x128xf32, #tpu.memory_space<vmem>>, %arg5: memref<1x128xf32, #tpu.memory_space<vmem>>, %arg6: memref<16x128xf32, #tpu.memory_space<vmem>>) attributes {dimension_semantics = [#tpu.dimension_semantics<parallel>], iteration_bounds = array<i64: 2>, scalar_prefetch = 0 : i64, scratch_operands = 0 : i64, tpu.core_type = #tpu.core_type<tc>, window_params = [{transform_indices = @transform_0, window_bounds = array<i64: 16, 32>}, {pipeline_mode = #tpu.pipeline_mode<synchronous>, transform_indices = @transform_1, window_bounds = array<i64: 32, 32>}, {pipeline_mode = #tpu.pipeline_mode<synchronous>, transform_indices = @transform_2, window_bounds = array<i64: 1, 32>}, {pipeline_mode = #tpu.pipeline_mode<synchronous>, transform_indices = @transform_3, window_bounds = array<i64: 32, 128>}, {pipeline_mode = #tpu.pipeline_mode<synchronous>, transform_indices = @transform_4, window_bounds = array<i64: 1, 128>}, {transform_indices = @transform_5, window_bounds = array<i64: 16, 128>}]} {
    %c0 = arith.constant 0 : index
    %c0_0 = arith.constant 0 : index
    %0 = vector.load %arg1[%c0, %c0_0] : memref<16x32xf32, #tpu.memory_space<vmem>>, vector<16x32xf32>
    %c0_1 = arith.constant 0 : index
    %c0_2 = arith.constant 0 : index
    %1 = vector.load %arg2[%c0_1, %c0_2] : memref<32x32xf32, #tpu.memory_space<vmem>>, vector<32x32xf32>
    %cst = arith.constant dense<0.000000e+00> : vector<16x32xf32>
    %2 = tpu.matmul %0, %1, %cst {dimension_numbers = #tpu.dot_dimension_numbers<[1], [0], [0], [1], [0, 0, 1, 1], [], []>} : vector<16x32xf32>, vector<32x32xf32>, vector<16x32xf32> -> vector<16x32xf32>
    %c0_3 = arith.constant 0 : index
    %c0_4 = arith.constant 0 : index
    %3 = vector.load %arg3[%c0_3, %c0_4] : memref<1x32xf32, #tpu.memory_space<vmem>>, vector<1x32xf32>
    %4 = vector.broadcast %3 : vector<1x32xf32> to vector<16x32xf32>
    %5 = arith.addf %2, %4 : vector<16x32xf32>
    %6 = math.tanh %5 : vector<16x32xf32>
    %c0_5 = arith.constant 0 : index
    %c0_6 = arith.constant 0 : index
    %7 = vector.load %arg4[%c0_5, %c0_6] : memref<32x128xf32, #tpu.memory_space<vmem>>, vector<32x128xf32>
    %cst_7 = arith.constant dense<0.000000e+00> : vector<16x128xf32>
    %8 = tpu.matmul %6, %7, %cst_7 {dimension_numbers = #tpu.dot_dimension_numbers<[1], [0], [0], [1], [0, 0, 1, 1], [], []>} : vector<16x32xf32>, vector<32x128xf32>, vector<16x128xf32> -> vector<16x128xf32>
    %c0_8 = arith.constant 0 : index
    %c0_9 = arith.constant 0 : index
    %9 = vector.load %arg5[%c0_8, %c0_9] : memref<1x128xf32, #tpu.memory_space<vmem>>, vector<1x128xf32>
    %10 = vector.broadcast %9 : vector<1x128xf32> to vector<16x128xf32>
    %11 = arith.addf %8, %10 : vector<16x128xf32>
    %c0_10 = arith.constant 0 : index
    %c0_11 = arith.constant 0 : index
    %12 = vector.load %arg6[%c0_10, %c0_11] : memref<16x128xf32, #tpu.memory_space<vmem>>, vector<16x128xf32>
    tpu.vector_store %arg6[%c0_10, %c0_11], %11 {strides = array<i32>} : memref<16x128xf32, #tpu.memory_space<vmem>>, vector<16x128xf32>,
    return
  }
  func.func @transform_0(%arg0: i32) -> (i32, i32) {
    %c0_i32 = arith.constant 0 : i32
    %c0_i32_0 = arith.constant 0 : i32
    return %arg0, %c0_i32 : i32, i32
  }
  func.func @transform_1(%arg0: i32) -> (i32, i32) {
    %c0_i32 = arith.constant 0 : i32
    %c0_i32_0 = arith.constant 0 : i32
    %c0_i32_1 = arith.constant 0 : i32
    return %c0_i32, %c0_i32_0 : i32, i32
  }
  func.func @transform_2(%arg0: i32) -> (i32, i32) {
    %c0_i32 = arith.constant 0 : i32
    %c0_i32_0 = arith.constant 0 : i32
    %c0_i32_1 = arith.constant 0 : i32
    return %c0_i32, %c0_i32_0 : i32, i32
  }
  func.func @transform_3(%arg0: i32) -> (i32, i32) {
    %c0_i32 = arith.constant 0 : i32
    %c0_i32_0 = arith.constant 0 : i32
    %c0_i32_1 = arith.constant 0 : i32
    return %c0_i32, %c0_i32_0 : i32, i32
  }
  func.func @transform_4(%arg0: i32) -> (i32, i32) {
    %c0_i32 = arith.constant 0 : i32
    %c0_i32_0 = arith.constant 0 : i32
    %c0_i32_1 = arith.constant 0 : i32
    return %c0_i32, %c0_i32_0 : i32, i32
  }
  func.func @transform_5(%arg0: i32) -> (i32, i32) {
    %c0_i32 = arith.constant 0 : i32
    %c0_i32_0 = arith.constant 0 : i32
    return %arg0, %c0_i32 : i32, i32
  }
}

module attributes {stable_mosaic.version = 11 : i64} {
  func.func @_multitask_kernel(%arg0: i32, %arg1: memref<16x32xf32, #tpu.memory_space<vmem>>, %arg2: memref<32x32xf32, #tpu.memory_space<vmem>>, %arg3: memref<1x32xf32, #tpu.memory_space<vmem>>, %arg4: memref<32x128xf32, #tpu.memory_space<vmem>>, %arg5: memref<1x128xf32, #tpu.memory_space<vmem>>, %arg6: memref<16x128xf32, #tpu.memory_space<vmem>>) attributes {dimension_semantics = [#tpu.dimension_semantics<parallel>], iteration_bounds = array<i64: 2>, scalar_prefetch = 0 : i64, scratch_operands = 0 : i64, tpu.core_type = #tpu.core_type<tc>, window_params = [{transform_indices = @transform_0, window_bounds = array<i64: 16, 32>}, {pipeline_mode = #tpu.pipeline_mode<synchronous>, transform_indices = @transform_1, window_bounds = array<i64: 32, 32>}, {pipeline_mode = #tpu.pipeline_mode<synchronous>, transform_indices = @transform_2, window_bounds = array<i64: 1, 32>}, {pipeline_mode = #tpu.pipeline_mode<synchronous>, transform_indices = @transform_3, window_bounds = array<i64: 32, 128>}, {pipeline_mode = #tpu.pipeline_mode<synchronous>, transform_indices = @transform_4, window_bounds = array<i64: 1, 128>}, {transform_indices = @transform_5, window_bounds = array<i64: 16, 128>}]} {
    %c0 = arith.constant 0 : index
    %c0_0 = arith.constant 0 : index
    %0 = vector.load %arg1[%c0, %c0_0] : memref<16x32xf32, #tpu.memory_space<vmem>>, vector<16x32xf32>
    %c0_1 = arith.constant 0 : index
    %c0_2 = arith.constant 0 : index
    %1 = vector.load %arg2[%c0_1, %c0_2] : memref<32x32xf32, #tpu.memory_space<vmem>>, vector<32x32xf32>
    %cst = arith.constant dense<0.000000e+00> : vector<16x32xf32>
    %2 = tpu.matmul %0, %1, %cst {dimension_numbers = #tpu.dot_dimension_numbers<[1], [0], [0], [1], [0, 0, 1, 1], [], []>} : vector<16x32xf32>, vector<32x32xf32>, vector<16x32xf32> -> vector<16x32xf32>
    %c0_3 = arith.constant 0 : index
    %c0_4 = arith.constant 0 : index
    %3 = vector.load %arg3[%c0_3, %c0_4] : memref<1x32xf32, #tpu.memory_space<vmem>>, vector<1x32xf32>
    %4 = vector.broadcast %3 : vector<1x32xf32> to vector<16x32xf32>
    %5 = arith.addf %2, %4 : vector<16x32xf32>
    %6 = math.tanh %5 : vector<16x32xf32>
    %c0_5 = arith.constant 0 : index
    %c0_6 = arith.constant 0 : index
    %7 = vector.load %arg4[%c0_5, %c0_6] : memref<32x128xf32, #tpu.memory_space<vmem>>, vector<32x128xf32>
    %cst_7 = arith.constant dense<0.000000e+00> : vector<16x128xf32>
    %8 = tpu.matmul %6, %7, %cst_7 {dimension_numbers = #tpu.dot_dimension_numbers<[1], [0], [0], [1], [0, 0, 1, 1], [], []>} : vector<16x32xf32>, vector<32x128xf32>, vector<16x128xf32> -> vector<16x128xf32>
    %c0_8 = arith.constant 0 : index
    %c0_9 = arith.constant 0 : index
    %9 = vector.load %arg5[%c0_8, %c0_9] : memref<1x128xf32, #tpu.memory_space<vmem>>, vector<1x128xf32>
    %10 = vector.broadcast %9 : vector<1x128xf32> to vector<16x128xf32>
    %11 = arith.addf %8, %10 : vector<16x128xf32>
    %c0_10 = arith.constant 0 : index
    %c0_11 = arith.constant 0 : index
    %12 = vector.load %arg6[%c0_10, %c0_11] : memref<16x128xf32, #tpu.memory_space<vmem>>, vector<16x128xf32>
    tpu.vector_store %arg6[%c0_10, %c0_11], %11 {strides = array<i32>} : memref<16x128xf32, #tpu.memory_space<vmem>>, vector<16x128xf32>,
    return
  }
  func.func @transform_0(%arg0: i32) -> (i32, i32) {
    %c0_i32 = arith.constant 0 : i32
    %c0_i32_0 = arith.constant 0 : i32
    return %arg0, %c0_i32 : i32, i32
  }
  func.func @transform_1(%arg0: i32) -> (i32, i32) {
    %c0_i32 = arith.constant 0 : i32
    %c0_i32_0 = arith.constant 0 : i32
    %c0_i32_1 = arith.constant 0 : i32
    return %c0_i32, %c0_i32_0 : i32, i32
  }
  func.func @transform_2(%arg0: i32) -> (i32, i32) {
    %c0_i32 = arith.constant 0 : i32
    %c0_i32_0 = arith.constant 0 : i32
    %c0_i32_1 = arith.constant 0 : i32
    return %c0_i32, %c0_i32_0 : i32, i32
  }
  func.func @transform_3(%arg0: i32) -> (i32, i32) {
    %c0_i32 = arith.constant 0 : i32
    %c0_i32_0 = arith.constant 0 : i32
    %c0_i32_1 = arith.constant 0 : i32
    return %c0_i32, %c0_i32_0 : i32, i32
  }
  func.func @transform_4(%arg0: i32) -> (i32, i32) {
    %c0_i32 = arith.constant 0 : i32
    %c0_i32_0 = arith.constant 0 : i32
    %c0_i32_1 = arith.constant 0 : i32
    return %c0_i32, %c0_i32_0 : i32, i32
  }
  func.func @transform_5(%arg0: i32) -> (i32, i32) {
    %c0_i32 = arith.constant 0 : i32
    %c0_i32_0 = arith.constant 0 : i32
    return %arg0, %c0_i32 : i32, i32
  }
}

</mosaic_0001>

<llo_original>
// kernel: tpu_custom_call.1
$region0: #{tpu_custom_call.1}
  #allocation0 [shape = 'u32[]', space=smem, size = 0x4, offset = 0x4, fixed_abs, tag = 'smem constant byte address 0x4 - core index']
  #allocation1 [shape = 'u32[144,128]{1,0:T(1,128)}', space=vmem, size = 0x12000, scoped, tag = 'internal scratch']
  %s0 = inlined_call_operand.hbm [shape: f32[24,32], index: 0, kind: input, shape index: {}]
  %s1 = inlined_call_operand.hbm [shape: f32[32,32], index: 1, kind: input, shape index: {}]
  %s2 = inlined_call_operand.vmem [shape: f32[1,32], index: 2, kind: input, shape index: {}]
  %s3 = inlined_call_operand.hbm [shape: f32[32,128], index: 3, kind: input, shape index: {}]
  %s4 = inlined_call_operand.vmem [shape: f32[1,128], index: 4, kind: input, shape index: {}]
  %s5 = inlined_call_operand.hbm [shape: f32[24,128], index: 5, kind: output, shape index: {}]
  %s6 = sld [smem:[#allocation0]]
  $region65: #{tpu_custom_call.1} parent=0
    _
  %s8 = ssub.s32 1, %s6
  %s9 = scalar_select 0, %s8, %s6
  $region1: #{tpu_custom_call.1} parent=0
    #allocation2 [shape = 'u8[16384]{0}', space=vmem, size = 0x4000, scoped, tag = 'input window, operand 0']
    #allocation3 [shape = 's32[2]{0}', space=sflag, size = 0x8, scoped, tag = 'scoped memory for tpu_custom_call.1']
    #allocation4 [shape = 's32[2]{0}', space=sflag, size = 0x8, scoped, tag = 'scoped memory for tpu_custom_call.1']
    #allocation5 [shape = 'u8[16384]{0}', space=vmem, size = 0x4000, scoped, tag = 'input window, operand 1, single buffered']
    #allocation6 [shape = 's32[1]{0}', space=sflag, size = 0x4, scoped, tag = 'scoped memory for tpu_custom_call.1']
    #allocation7 [shape = 'u8[16384]{0}', space=vmem, size = 0x4000, scoped, tag = 'input window, operand 3, single buffered']
    #allocation8 [shape = 'u8[16384]{0}', space=vmem, size = 0x4000, scoped, tag = 'output window, operand 0']
    %10 = vsyncpa [#allocation3], 0
    %s11 = scalar_lea.sflag [#allocation3], 1
    %12 = vsyncpa %s11, 0
    %13 = vsyncpa [#allocation6], 0
    %14 = vsyncpa [#allocation4], 0
    %s15 = scalar_lea.sflag [#allocation4], 1
    %16 = vsyncpa %s15, 0
    loop: start=0, step=1, limit=4
    $region2: #{tpu_custom_call.1} parent=1 // loop_pre_header
      _
    $region3: #{tpu_custom_call.1} parent=1 // loop_header
      %s18 = sphi 0, %s22
      %p19 = scmp.ge.s32.totalorder %s18, 4
      %s28 = sphi 0, %s30
      %s31 = sphi 0, %s28
      %s32 = sphi 0, %s31
      %s48 = sphi 0, %s32
      %s52 = sphi 0, %s52
      %s54 = sphi 0, %s52
      %s55 = sphi 0, %s54
      %s69 = sphi 0, %s55
      %s73 = sphi 0, %s73
      %s75 = sphi 0, %s73
      %s76 = sphi 0, %s75
      %s90 = sphi 0, %s76
      %s94 = sphi 0, %s94
      %s96 = sphi 0, %s94
      %s97 = sphi 0, %s96
      %s111 = sphi 0, %s97
      %s115 = sphi 0, %s115
      %s117 = sphi 0, %s115
      %s118 = sphi 0, %s117
      %s132 = sphi 0, %s118
      %s138 = sphi 0, %s140
      %s141 = sphi 0, %s138
      %s142 = sphi 0, %s141
      %s158 = sphi 0, %s142
    $region4: #{tpu_custom_call.1} parent=1 // loop_header_branch
      %21 = sbr.rel (%p19) target = $region8
    $region5: #{tpu_custom_call.1} parent=1 // loop_body
      %s23 = ssub.s32 %s18, 1
      %s24 = ssub.s32 %s18, 2
      %s25 = sadd.s32 %s18, 1
      %s26 = ssub.s32 %s18, %s25
      %p27 = scmp.eq.s32.totalorder %s26, 0
      %s29 = sadd.s32 %s28, 1
      %s30 = scalar_select %p27, %s28, %s29
      %p33 = pneg %p27
      %p34 = scmp.eq.s32.totalorder %s18, 1
      %p35 = por %p33, %p34
      %p36 = scmp.ne.s32.totalorder %s28, %s31
      %p37 = scmp.eq.s32.totalorder %s18, 0
      %p38 = por %p36, %p37
      %p39 = scmp.ne.s32.totalorder %s28, %s31
      %p40 = scmp.eq.s32.totalorder %s23, 1
      %p41 = por %p39, %p40
      %p42 = scmp.ne.s32.totalorder %s31, %s32
      %p43 = scmp.eq.s32.totalorder %s23, 0
      %p44 = por %p42, %p43
      %p45 = scmp.ne.s32.totalorder %s31, %s32
      %p46 = scmp.eq.s32.totalorder %s24, 1
      %p47 = por %p45, %p46
      %p49 = scmp.ne.s32.totalorder %s32, %s48
      %p50 = scmp.eq.s32.totalorder %s24, 0
      %p51 = por %p49, %p50
      %s53 = sadd.s32 %s52, 1
      %p56 = scmp.eq.s32.totalorder %s18, 1
      %p57 = scmp.ne.s32.totalorder %s52, %s54
      %p58 = scmp.eq.s32.totalorder %s18, 0
      %p59 = por %p57, %p58
      %p60 = scmp.ne.s32.totalorder %s52, %s54
      %p61 = scmp.eq.s32.totalorder %s23, 1
      %p62 = por %p60, %p61
      %p63 = scmp.ne.s32.totalorder %s54, %s55
      %p64 = scmp.eq.s32.totalorder %s23, 0
      %p65 = por %p63, %p64
      %p66 = scmp.ne.s32.totalorder %s54, %s55
      %p67 = scmp.eq.s32.totalorder %s24, 1
      %p68 = por %p66, %p67
      %p70 = scmp.ne.s32.totalorder %s55, %s69
      %p71 = scmp.eq.s32.totalorder %s24, 0
      %p72 = por %p70, %p71
      %s74 = sadd.s32 %s73, 1
      %p77 = scmp.eq.s32.totalorder %s18, 1
      %p78 = scmp.ne.s32.totalorder %s73, %s75
      %p79 = scmp.eq.s32.totalorder %s18, 0
      %p80 = por %p78, %p79
      %p81 = scmp.ne.s32.totalorder %s73, %s75
      %p82 = scmp.eq.s32.totalorder %s23, 1
      %p83 = por %p81, %p82
      %p84 = scmp.ne.s32.totalorder %s75, %s76
      %p85 = scmp.eq.s32.totalorder %s23, 0
      %p86 = por %p84, %p85
      %p87 = scmp.ne.s32.totalorder %s75, %s76
      %p88 = scmp.eq.s32.totalorder %s24, 1
      %p89 = por %p87, %p88
      %p91 = scmp.ne.s32.totalorder %s76, %s90
      %p92 = scmp.eq.s32.totalorder %s24, 0
      %p93 = por %p91, %p92
      %s95 = sadd.s32 %s94, 1
      %p98 = scmp.eq.s32.totalorder %s18, 1
      %p99 = scmp.ne.s32.totalorder %s94, %s96
      %p100 = scmp.eq.s32.totalorder %s18, 0
      %p101 = por %p99, %p100
      %p102 = scmp.ne.s32.totalorder %s94, %s96
      %p103 = scmp.eq.s32.totalorder %s23, 1
      %p104 = por %p102, %p103
      %p105 = scmp.ne.s32.totalorder %s96, %s97
      %p106 = scmp.eq.s32.totalorder %s23, 0
      %p107 = por %p105, %p106
      %p108 = scmp.ne.s32.totalorder %s96, %s97
      %p109 = scmp.eq.s32.totalorder %s24, 1
      %p110 = por %p108, %p109
      %p112 = scmp.ne.s32.totalorder %s97, %s111
      %p113 = scmp.eq.s32.totalorder %s24, 0
      %p114 = por %p112, %p113
      %s116 = sadd.s32 %s115, 1
      %p119 = scmp.eq.s32.totalorder %s18, 1
      %p120 = scmp.ne.s32.totalorder %s115, %s117
      %p121 = scmp.eq.s32.totalorder %s18, 0
      %p122 = por %p120, %p121
      %p123 = scmp.ne.s32.totalorder %s115, %s117
      %p124 = scmp.eq.s32.totalorder %s23, 1
      %p125 = por %p123, %p124
      %p126 = scmp.ne.s32.totalorder %s117, %s118
      %p127 = scmp.eq.s32.totalorder %s23, 0
      %p128 = por %p126, %p127
      %p129 = scmp.ne.s32.totalorder %s117, %s118
      %p130 = scmp.eq.s32.totalorder %s24, 1
      %p131 = por %p129, %p130
      %p133 = scmp.ne.s32.totalorder %s118, %s132
      %p134 = scmp.eq.s32.totalorder %s24, 0
      %p135 = por %p133, %p134
      %s136 = ssub.s32 %s18, %s25
      %p137 = scmp.eq.s32.totalorder %s136, 0
      %s139 = sadd.s32 %s138, 1
      %s140 = scalar_select %p137, %s138, %s139
      %p143 = pneg %p137
      %p144 = scmp.eq.s32.totalorder %s18, 1
      %p145 = por %p143, %p144
      %p146 = scmp.ne.s32.totalorder %s138, %s141
      %p147 = scmp.eq.s32.totalorder %s18, 0
      %p148 = por %p146, %p147
      %p149 = scmp.ne.s32.totalorder %s138, %s141
      %p150 = scmp.eq.s32.totalorder %s23, 1
      %p151 = por %p149, %p150
      %p152 = scmp.ne.s32.totalorder %s141, %s142
      %p153 = scmp.eq.s32.totalorder %s23, 0
      %p154 = por %p152, %p153
      %p155 = scmp.ne.s32.totalorder %s141, %s142
      %p156 = scmp.eq.s32.totalorder %s24, 1
      %p157 = por %p155, %p156
      %p159 = scmp.ne.s32.totalorder %s142, %s158
      %p160 = scmp.eq.s32.totalorder %s24, 0
      %p161 = por %p159, %p160
      %p162 = scmp.le.s32.totalorder 1, %s18
      %p163 = scmp.lt.s32.totalorder %s18, 3
      %p164 = pnand %p162, %p163
      %p165 = pneg %p164
      // Predicated region
      $region9: #{tpu_custom_call.1} parent=5 // pred_check
        _
      $region10: #{tpu_custom_call.1} parent=5 // pred_check_branch
        %167 = sbr.rel (%p164) target = $region12
      $region11: #{tpu_custom_call.1} parent=5 // pred_region
        %s168 = ssub.s32 %s18, 1
        // Predicated region
        $region13: #{tpu_custom_call.1} parent=11 // pred_check
          %p169 = pneg %p65
        $region14: #{tpu_custom_call.1} parent=11 // pred_check_branch
          %171 = sbr.rel (%p169) target = $region16
        $region15: #{tpu_custom_call.1} parent=11 // pred_region
          %s173 = ssub.s32 512, 512
          %174 = vsyncadd [#allocation6], %s173
          %s175 = sshll.u32 [#allocation5], 4
          %s176 = int_to_ptr.vmem [resolvable:$true] %s175
          %181 = dma.hbm_to_vmem [thread:$0]  %s1, 512, %s176, [#allocation6], 128, 128, 8
        $region16: #{tpu_custom_call.1} parent=11 // pred_fallthru
          _
        // Predicated region
        $region17: #{tpu_custom_call.1} parent=11 // pred_check
          %p182 = pneg %p86
        $region18: #{tpu_custom_call.1} parent=11 // pred_check_branch
          %184 = sbr.rel (%p182) target = $region20
        $region19: #{tpu_custom_call.1} parent=11 // pred_region
          _
        $region20: #{tpu_custom_call.1} parent=11 // pred_fallthru
          _
        // Predicated region
        $region21: #{tpu_custom_call.1} parent=11 // pred_check
          %p185 = pneg %p107
        $region22: #{tpu_custom_call.1} parent=11 // pred_check_branch
          %187 = sbr.rel (%p185) target = $region24
        $region23: #{tpu_custom_call.1} parent=11 // pred_region
          %s189 = ssub.s32 512, 512
          %190 = vsyncadd [#allocation6], %s189
          %s191 = sshll.u32 [#allocation7], 4
          %s192 = int_to_ptr.vmem [resolvable:$true] %s191
          %197 = dma.hbm_to_vmem [thread:$0]  %s3, 512, %s192, [#allocation6], 128, 128, 8
        $region24: #{tpu_custom_call.1} parent=11 // pred_fallthru
          _
        // Predicated region
        $region25: #{tpu_custom_call.1} parent=11 // pred_check
          %p198 = pneg %p128
        $region26: #{tpu_custom_call.1} parent=11 // pred_check_branch
          %200 = sbr.rel (%p198) target = $region28
        $region27: #{tpu_custom_call.1} parent=11 // pred_region
          _
        $region28: #{tpu_custom_call.1} parent=11 // pred_fallthru
          _
      $region12: #{tpu_custom_call.1} parent=5 // pred_fallthru
        _
      %p201 = scmp.lt.s32.totalorder %s18, 2
      // Predicated region
      $region29: #{tpu_custom_call.1} parent=5 // pred_check
        %p202 = pneg %p201
      $region30: #{tpu_custom_call.1} parent=5 // pred_check_branch
        %204 = sbr.rel (%p202) target = $region32
      $region31: #{tpu_custom_call.1} parent=5 // pred_region
        // Predicated region
        $region33: #{tpu_custom_call.1} parent=31 // pred_check
          %p205 = pneg %p38
        $region34: #{tpu_custom_call.1} parent=31 // pred_check_branch
          %207 = sbr.rel (%p205) target = $region36
        $region35: #{tpu_custom_call.1} parent=31 // pred_region
          %s208 = sand.u32 %s28, 1
          %s209 = scalar_lea.sflag [#allocation3], %s208
          %s210 = sand.u32 %s28, 1
          %s211 = smul.addr %s210, 16
          %s212 = scalar_lea.vmem [#allocation2], %s211
          %s213 = smul.u32 2, %s18
          %s214 = ssub.s32 3, %s213
          %p215 = scmp.lt.s32.totalorder %s214, 2
          %s216 = scalar_select %p215, %s214, 2
          %s217 = smul.u32 128, %s216
          %s219 = ssub.s32 256, %s217
          %220 = vsyncadd %s209, %s219
          %p221 = scmp.ne.s32.totalorder 0, %s217
          %s222 = smul.addr %s213, 128
          %s223 = scalar_lea.hbm %s0, %s222
          %s224 = smul.u32 8, %s216
          %s225 = sshll.u32 %s212, 4
          %s226 = int_to_ptr.vmem [resolvable:$true] %s225
          %s227 = sshll.u32 %s224, 4
          %231 = dma.hbm_to_vmem [thread:$0]  (%p221), %s223, %s227, %s226, %s209, 128, 128, 8
        $region36: #{tpu_custom_call.1} parent=31 // pred_fallthru
          _
      $region32: #{tpu_custom_call.1} parent=5 // pred_fallthru
        _
      %p232 = scmp.le.s32.totalorder 1, %s18
      %p233 = scmp.lt.s32.totalorder %s18, 3
      %p234 = pnand %p232, %p233
      %p235 = pneg %p234
      // Predicated region
      $region37: #{tpu_custom_call.1} parent=5 // pred_check
        _
      $region38: #{tpu_custom_call.1} parent=5 // pred_check_branch
        %237 = sbr.rel (%p234) target = $region40
      $region39: #{tpu_custom_call.1} parent=5 // pred_region
        %s238 = ssub.s32 %s18, 1
        %s239 = sand.u32 %s31, 1
        %s240 = scalar_lea.sflag [#allocation3], %s239
        %s241 = sand.u32 %s31, 1
        %s242 = smul.addr %s241, 16
        %s243 = scalar_lea.vmem [#allocation2], %s242
        // Predicated region
        $region41: #{tpu_custom_call.1} parent=39 // pred_check
          %p244 = pneg %p44
        $region42: #{tpu_custom_call.1} parent=39 // pred_check_branch
          %246 = sbr.rel (%p244) target = $region44
        $region43: #{tpu_custom_call.1} parent=39 // pred_region
          %247 = dma.done %s240, 256
        $region44: #{tpu_custom_call.1} parent=39 // pred_fallthru
          _
        // Predicated region
        $region45: #{tpu_custom_call.1} parent=39 // pred_check
          %p248 = pneg %p65
        $region46: #{tpu_custom_call.1} parent=39 // pred_check_branch
          %250 = sbr.rel (%p248) target = $region48
        $region47: #{tpu_custom_call.1} parent=39 // pred_region
          %251 = dma.done [#allocation6], 512
        $region48: #{tpu_custom_call.1} parent=39 // pred_fallthru
          _
        // Predicated region
        $region49: #{tpu_custom_call.1} parent=39 // pred_check
          %p252 = pneg %p107
        $region50: #{tpu_custom_call.1} parent=39 // pred_check_branch
          %254 = sbr.rel (%p252) target = $region52
        $region51: #{tpu_custom_call.1} parent=39 // pred_region
          %255 = dma.done [#allocation6], 512
        $region52: #{tpu_custom_call.1} parent=39 // pred_fallthru
          _
        %s256 = sand.u32 %s31, 1
        %s257 = scalar_lea.sflag [#allocation3], %s256
        %s258 = sand.u32 %s31, 1
        %s259 = smul.addr %s258, 16
        %s260 = scalar_lea.vmem [#allocation2], %s259
        %p261 = pneg %p44
        %p262 = pneg %p41
        %p263 = pneg %p65
        %p264 = pneg %p62
        %p265 = pneg %p86
        %p266 = pneg %p83
        %p267 = pneg %p107
        %p268 = pneg %p104
        %p269 = pneg %p128
        %p270 = pneg %p125
        %p271 = pneg %p154
        %p272 = pneg %p151
        %s273 = sand.u32 %s141, 1
        %s274 = scalar_lea.sflag [#allocation4], %s273
        %s275 = sand.u32 %s141, 1
        %s276 = smul.addr %s275, 16
        %s277 = scalar_lea.vmem [#allocation8], %s276
        %s278 = smul.u32 2, %s23
        %s279 = ssub.s32 3, %s278
        %p280 = scmp.lt.s32.totalorder %s279, 2
        %s281 = scalar_select %p280, %s279, 2
        %s282 = smul.u32 128, %s281
        %s283 = smul.u32 2, %s23
        %s284 = ssub.s32 3, %s283
        %p285 = scmp.lt.s32.totalorder %s284, 2
        %s286 = scalar_select %p285, %s284, 2
        %s287 = smul.u32 128, %s286
        %v288 = vld [vmem:[%s243] sm:$0xff]
        %v289 = vld [vmem:[%s243 + $0x8] sm:$0xff]
        %v290 = vld [vmem:[#allocation5] sm:$0xff]
        %v291 = vld [vmem:[#allocation5 + $0x8] sm:$0xff]
        %v292 = vld [vmem:[#allocation5 + $0x10] sm:$0xff]
        %v293 = vld [vmem:[#allocation5 + $0x18] sm:$0xff]
        %v294 = vld [vmem:[%s2] sm:$0x1]
        %v296 = vlaneseq
        %v297 = vshrl.u32 %v296, 7
        %v298 = vsub.s32 0, %v297
        %v299 = vrot.slane %v294, %v298
        %vm301 = vcmask 261120
        %v303 = vsel %vm301, %v288, 0
        %v306 = vsel %vm301, %v289, 0
        %308 = vmatprep.subr.mxu0 0.0
        %309 = vmatpush1.msra.mxu0 %v290
        %310 = vmatprep.subr.mxu0 0.0
        %311 = vmatpush1.msra.mxu0 %v291
        %312 = vmatprep.subr.mxu0 0.0
        %313 = vmatpush1.msra.mxu0 %v292
        %314 = vmatprep.subr.mxu0 0.0
        %315 = vmatpush1.msra.mxu0 %v293
        %316 = vmatprep.subr.mxu0 0.0
        %317 = vmatpush1.msra.mxu0 0.0
        %318 = vmatprep.subr.mxu0 0.0
        %319 = vmatpush1.msra.mxu0 0.0
        %320 = vmatprep.subr.mxu0 0.0
        %321 = vmatpush1.msra.mxu0 0.0
        %322 = vmatprep.subr.mxu0 0.0
        %323 = vmatpush1.msra.mxu0 0.0
        %324 = vmatprep.subr.mxu0 0.0
        %325 = vmatpush1.msra.mxu0 0.0
        %326 = vmatprep.subr.mxu0 0.0
        %327 = vmatpush1.msra.mxu0 0.0
        %328 = vmatprep.subr.mxu0 0.0
        %329 = vmatpush1.msra.mxu0 0.0
        %330 = vmatprep.subr.mxu0 0.0
        %331 = vmatpush1.msra.mxu0 0.0
        %332 = vmatprep.subr.mxu0 0.0
        %333 = vmatpush1.msra.mxu0 0.0
        %334 = vmatprep.subr.mxu0 0.0
        %335 = vmatpush1.msra.mxu0 0.0
        %336 = vmatprep.subr.mxu0 0.0
        %337 = vmatpush1.msra.mxu0 0.0
        %338 = vmatprep.subr.mxu0 0.0
        %339 = vmatpush1.msra.mxu0 0.0
        %340 = vmatprep.subr.mxu0 0.0
        %341 = vmatpush1.msra.mxu0 0.0
        %342 = vmatprep.subr.mxu0 0.0
        %343 = vmatpush1.msra.mxu0 0.0
        %344 = vmatprep.subr.mxu0 0.0
        %345 = vmatpush1.msra.mxu0 0.0
        %346 = vmatprep.subr.mxu0 0.0
        %347 = vmatpush1.msra.mxu0 0.0
        %348 = vmatprep.subr.mxu0 0.0
        %349 = vmatpush1.msra.mxu0 0.0
        %350 = vmatprep.subr.mxu0 0.0
        %351 = vmatpush1.msra.mxu0 0.0
        %352 = vmatprep.subr.mxu0 0.0
        %353 = vmatpush1.msra.mxu0 0.0
        %354 = vmatprep.subr.mxu0 0.0
        %355 = vmatpush1.msra.mxu0 0.0
        %356 = vmatprep.subr.mxu0 0.0
        %357 = vmatpush1.msra.mxu0 0.0
        %358 = vmatprep.subr.mxu0 0.0
        %359 = vmatpush1.msra.mxu0 0.0
        %360 = vmatprep.subr.mxu0 0.0
        %361 = vmatpush1.msra.mxu0 0.0
        %362 = vmatprep.subr.mxu0 0.0
        %363 = vmatpush1.msra.mxu0 0.0
        %364 = vmatprep.subr.mxu0 0.0
        %365 = vmatpush1.msra.mxu0 0.0
        %366 = vmatprep.subr.mxu0 0.0
        %367 = vmatpush1.msra.mxu0 0.0
        %368 = vmatprep.subr.mxu0 0.0
        %369 = vmatpush1.msra.mxu0 0.0
        %370 = vmatprep.subr.mxu0 0.0
        %371 = vmatpush1.msra.mxu0 0.0
        %372 = vmatprep.mubr.f32.mxu0 0.0
        %373 = vmatmul.mubr.f32.gmra.mrb[0].mxu0 %v303
        %v374 = vpop.f32.mrb[0].mxu0
        %v375 = vadd.f32 %v299, %v374
        %v376 = vpop.f32.mrb[0].mxu0
        %377 = vmatprep.mubr.f32.mxu0 0.0
        %378 = vmatmul.mubr.f32.gmra.mrb[0].mxu0 %v306
        %v379 = vpop.f32.mrb[0].mxu0
        %v380 = vadd.f32 %v299, %v379
        %v381 = vpop.f32.mrb[0].mxu0
        %382 = vdwg.mxu0
        %v383 = vtanh.pop %v375
        %v384 = vtanh.pop %v380
        %v385 = vld [vmem:[#allocation7] sm:$0xff]
        %v386 = vld [vmem:[#allocation7 + $0x8] sm:$0xff]
        %v387 = vld [vmem:[#allocation7 + $0x10] sm:$0xff]
        %v388 = vld [vmem:[#allocation7 + $0x18] sm:$0xff]
        %v389 = vld [vmem:[%s4] sm:$0x1]
        %v391 = vlaneseq
        %v392 = vshrl.u32 %v391, 7
        %v393 = vsub.s32 0, %v392
        %v394 = vrot.slane %v389, %v393
        %v397 = vsel %vm301, %v383, 0
        %v400 = vsel %vm301, %v384, 0
        %402 = vmatprep.subr.mxu0 0.0
        %403 = vmatpush1.msra.mxu0 %v385
        %404 = vmatprep.subr.mxu0 0.0
        %405 = vmatpush1.msra.mxu0 %v386
        %406 = vmatprep.subr.mxu0 0.0
        %407 = vmatpush1.msra.mxu0 %v387
        %408 = vmatprep.subr.mxu0 0.0
        %409 = vmatpush1.msra.mxu0 %v388
        %410 = vmatprep.subr.mxu0 0.0
        %411 = vmatpush1.msra.mxu0 0.0
        %412 = vmatprep.subr.mxu0 0.0
        %413 = vmatpush1.msra.mxu0 0.0
        %414 = vmatprep.subr.mxu0 0.0
        %415 = vmatpush1.msra.mxu0 0.0
        %416 = vmatprep.subr.mxu0 0.0
        %417 = vmatpush1.msra.mxu0 0.0
        %418 = vmatprep.subr.mxu0 0.0
        %419 = vmatpush1.msra.mxu0 0.0
        %420 = vmatprep.subr.mxu0 0.0
        %421 = vmatpush1.msra.mxu0 0.0
        %422 = vmatprep.subr.mxu0 0.0
        %423 = vmatpush1.msra.mxu0 0.0
        %424 = vmatprep.subr.mxu0 0.0
        %425 = vmatpush1.msra.mxu0 0.0
        %426 = vmatprep.subr.mxu0 0.0
        %427 = vmatpush1.msra.mxu0 0.0
        %428 = vmatprep.subr.mxu0 0.0
        %429 = vmatpush1.msra.mxu0 0.0
        %430 = vmatprep.subr.mxu0 0.0
        %431 = vmatpush1.msra.mxu0 0.0
        %432 = vmatprep.subr.mxu0 0.0
        %433 = vmatpush1.msra.mxu0 0.0
        %434 = vmatprep.subr.mxu0 0.0
        %435 = vmatpush1.msra.mxu0 0.0
        %436 = vmatprep.subr.mxu0 0.0
        %437 = vmatpush1.msra.mxu0 0.0
        %438 = vmatprep.subr.mxu0 0.0
        %439 = vmatpush1.msra.mxu0 0.0
        %440 = vmatprep.subr.mxu0 0.0
        %441 = vmatpush1.msra.mxu0 0.0
        %442 = vmatprep.subr.mxu0 0.0
        %443 = vmatpush1.msra.mxu0 0.0
        %444 = vmatprep.subr.mxu0 0.0
        %445 = vmatpush1.msra.mxu0 0.0
        %446 = vmatprep.subr.mxu0 0.0
        %447 = vmatpush1.msra.mxu0 0.0
        %448 = vmatprep.subr.mxu0 0.0
        %449 = vmatpush1.msra.mxu0 0.0
        %450 = vmatprep.subr.mxu0 0.0
        %451 = vmatpush1.msra.mxu0 0.0
        %452 = vmatprep.subr.mxu0 0.0
        %453 = vmatpush1.msra.mxu0 0.0
        %454 = vmatprep.subr.mxu0 0.0
        %455 = vmatpush1.msra.mxu0 0.0
        %456 = vmatprep.subr.mxu0 0.0
        %457 = vmatpush1.msra.mxu0 0.0
        %458 = vmatprep.subr.mxu0 0.0
        %459 = vmatpush1.msra.mxu0 0.0
        %460 = vmatprep.subr.mxu0 0.0
        %461 = vmatpush1.msra.mxu0 0.0
        %462 = vmatprep.subr.mxu0 0.0
        %463 = vmatpush1.msra.mxu0 0.0
        %464 = vmatprep.subr.mxu0 0.0
        %465 = vmatpush1.msra.mxu0 0.0
        %466 = vmatprep.mubr.f32.mxu0 0.0
        %467 = vmatmul.mubr.f32.gmra.mrb[0].mxu0 %v397
        %v468 = vpop.f32.mrb[0].mxu0
        %v469 = vadd.f32 %v394, %v468
        %v470 = vpop.f32.mrb[0].mxu0
        %471 = vmatprep.mubr.f32.mxu0 0.0
        %472 = vmatmul.mubr.f32.gmra.mrb[0].mxu0 %v400
        %v473 = vpop.f32.mrb[0].mxu0
        %v474 = vadd.f32 %v394, %v473
        %v475 = vpop.f32.mrb[0].mxu0
        %476 = vdwg.mxu0
        %477 = vst [vmem:[%s277] sm:$0xff] %v469
        %478 = vst [vmem:[%s277 + $0x8] sm:$0xff] %v474
        %s479 = sand.u32 %s141, 1
        %s480 = scalar_lea.sflag [#allocation4], %s479
        %s481 = sand.u32 %s141, 1
        %s482 = smul.addr %s481, 16
        %s483 = scalar_lea.vmem [#allocation8], %s482
        // Predicated region
        $region53: #{tpu_custom_call.1} parent=39 // pred_check
          %p484 = pneg %p151
        $region54: #{tpu_custom_call.1} parent=39 // pred_check_branch
          %486 = sbr.rel (%p484) target = $region56
        $region55: #{tpu_custom_call.1} parent=39 // pred_region
          %s487 = smul.u32 2, %s23
          %s488 = ssub.s32 3, %s487
          %p489 = scmp.lt.s32.totalorder %s488, 2
          %s490 = scalar_select %p489, %s488, 2
          %s491 = smul.u32 128, %s490
          %s493 = ssub.s32 256, %s491
          %494 = vsyncadd %s480, %s493
          %p495 = scmp.ne.s32.totalorder 0, %s491
          %s496 = smul.addr %s487, 128
          %s497 = scalar_lea.hbm %s5, %s496
          %s498 = smul.u32 8, %s490
          %s499 = sshll.u32 %s483, 4
          %s500 = int_to_ptr.vmem [resolvable:$true] %s499
          %s501 = sshll.u32 %s498, 4
          %505 = dma.vmem_to_hbm [thread:$0]  (%p495), %s500, %s501, %s497, %s480, 128, 128, 8
        $region56: #{tpu_custom_call.1} parent=39 // pred_fallthru
          _
      $region40: #{tpu_custom_call.1} parent=5 // pred_fallthru
        _
      %p506 = scmp.le.s32.totalorder 2, %s18
      // Predicated region
      $region57: #{tpu_custom_call.1} parent=5 // pred_check
        %p507 = pneg %p506
      $region58: #{tpu_custom_call.1} parent=5 // pred_check_branch
        %509 = sbr.rel (%p507) target = $region60
      $region59: #{tpu_custom_call.1} parent=5 // pred_region
        %s510 = ssub.s32 %s18, 2
        // Predicated region
        $region61: #{tpu_custom_call.1} parent=59 // pred_check
          %p511 = pneg %p157
        $region62: #{tpu_custom_call.1} parent=59 // pred_check_branch
          %513 = sbr.rel (%p511) target = $region64
        $region63: #{tpu_custom_call.1} parent=59 // pred_region
          %s514 = sand.u32 %s142, 1
          %s515 = scalar_lea.sflag [#allocation4], %s514
          %s516 = sand.u32 %s142, 1
          %s517 = smul.addr %s516, 16
          %s518 = scalar_lea.vmem [#allocation8], %s517
          %519 = dma.done %s515, 256
        $region64: #{tpu_custom_call.1} parent=59 // pred_fallthru
          _
      $region60: #{tpu_custom_call.1} parent=5 // pred_fallthru
        _
    $region6: #{tpu_custom_call.1} parent=1 // loop_footer
      %s22 = sadd.s32 1, %s18
    $region7: #{tpu_custom_call.1} parent=1 // loop_footer_branch
      %17 = sbr.rel target = $region3
    $region8: #{tpu_custom_call.1} parent=1 // loop_exit
      _
    %520 = vsyncpa [#allocation3], 1
    %s521 = scalar_lea.sflag [#allocation3], 1
    %522 = vsyncpa %s521, 1
    %523 = vsyncpa [#allocation6], 1
    %524 = vsyncpa [#allocation4], 1
    %s525 = scalar_lea.sflag [#allocation4], 1
    %526 = vsyncpa %s525, 1

// kernel: tpu_custom_call.1
$region0: #{tpu_custom_call.1}
  #allocation0 [shape = 'u32[]', space=smem, size = 0x4, offset = 0x4, fixed_abs, tag = 'smem constant byte address 0x4 - core index']
  #allocation1 [shape = 'u32[144,128]{1,0:T(1,128)}', space=vmem, size = 0x12000, scoped, tag = 'internal scratch']
  %s0 = inlined_call_operand.hbm [shape: f32[24,32], index: 0, kind: input, shape index: {}]
  %s1 = inlined_call_operand.hbm [shape: f32[32,32], index: 1, kind: input, shape index: {}]
  %s2 = inlined_call_operand.vmem [shape: f32[1,32], index: 2, kind: input, shape index: {}]
  %s3 = inlined_call_operand.hbm [shape: f32[32,128], index: 3, kind: input, shape index: {}]
  %s4 = inlined_call_operand.vmem [shape: f32[1,128], index: 4, kind: input, shape index: {}]
  %s5 = inlined_call_operand.hbm [shape: f32[24,128], index: 5, kind: output, shape index: {}]
  %s6 = sld [smem:[#allocation0]]
  $region65: #{tpu_custom_call.1} parent=0
    _
  %s8 = ssub.s32 1, %s6
  %s9 = scalar_select 0, %s8, %s6
  $region1: #{tpu_custom_call.1} parent=0
    #allocation2 [shape = 'u8[16384]{0}', space=vmem, size = 0x4000, scoped, tag = 'input window, operand 0']
    #allocation3 [shape = 's32[2]{0}', space=sflag, size = 0x8, scoped, tag = 'scoped memory for tpu_custom_call.1']
    #allocation4 [shape = 's32[2]{0}', space=sflag, size = 0x8, scoped, tag = 'scoped memory for tpu_custom_call.1']
    #allocation5 [shape = 'u8[16384]{0}', space=vmem, size = 0x4000, scoped, tag = 'input window, operand 1, single buffered']
    #allocation6 [shape = 's32[1]{0}', space=sflag, size = 0x4, scoped, tag = 'scoped memory for tpu_custom_call.1']
    #allocation7 [shape = 'u8[16384]{0}', space=vmem, size = 0x4000, scoped, tag = 'input window, operand 3, single buffered']
    #allocation8 [shape = 'u8[16384]{0}', space=vmem, size = 0x4000, scoped, tag = 'output window, operand 0']
    %10 = vsyncpa [#allocation3], 0
    %s11 = scalar_lea.sflag [#allocation3], 1
    %12 = vsyncpa %s11, 0
    %13 = vsyncpa [#allocation6], 0
    %14 = vsyncpa [#allocation4], 0
    %s15 = scalar_lea.sflag [#allocation4], 1
    %16 = vsyncpa %s15, 0
    loop: start=0, step=1, limit=4
    $region2: #{tpu_custom_call.1} parent=1 // loop_pre_header
      _
    $region3: #{tpu_custom_call.1} parent=1 // loop_header
      %s18 = sphi 0, %s22
      %p19 = scmp.ge.s32.totalorder %s18, 4
      %s28 = sphi 0, %s30
      %s31 = sphi 0, %s28
      %s32 = sphi 0, %s31
      %s48 = sphi 0, %s32
      %s52 = sphi 0, %s52
      %s54 = sphi 0, %s52
      %s55 = sphi 0, %s54
      %s69 = sphi 0, %s55
      %s73 = sphi 0, %s73
      %s75 = sphi 0, %s73
      %s76 = sphi 0, %s75
      %s90 = sphi 0, %s76
      %s94 = sphi 0, %s94
      %s96 = sphi 0, %s94
      %s97 = sphi 0, %s96
      %s111 = sphi 0, %s97
      %s115 = sphi 0, %s115
      %s117 = sphi 0, %s115
      %s118 = sphi 0, %s117
      %s132 = sphi 0, %s118
      %s138 = sphi 0, %s140
      %s141 = sphi 0, %s138
      %s142 = sphi 0, %s141
      %s158 = sphi 0, %s142
    $region4: #{tpu_custom_call.1} parent=1 // loop_header_branch
      %21 = sbr.rel (%p19) target = $region8
    $region5: #{tpu_custom_call.1} parent=1 // loop_body
      %s23 = ssub.s32 %s18, 1
      %s24 = ssub.s32 %s18, 2
      %s25 = sadd.s32 %s18, 1
      %s26 = ssub.s32 %s18, %s25
      %p27 = scmp.eq.s32.totalorder %s26, 0
      %s29 = sadd.s32 %s28, 1
      %s30 = scalar_select %p27, %s28, %s29
      %p33 = pneg %p27
      %p34 = scmp.eq.s32.totalorder %s18, 1
      %p35 = por %p33, %p34
      %p36 = scmp.ne.s32.totalorder %s28, %s31
      %p37 = scmp.eq.s32.totalorder %s18, 0
      %p38 = por %p36, %p37
      %p39 = scmp.ne.s32.totalorder %s28, %s31
      %p40 = scmp.eq.s32.totalorder %s23, 1
      %p41 = por %p39, %p40
      %p42 = scmp.ne.s32.totalorder %s31, %s32
      %p43 = scmp.eq.s32.totalorder %s23, 0
      %p44 = por %p42, %p43
      %p45 = scmp.ne.s32.totalorder %s31, %s32
      %p46 = scmp.eq.s32.totalorder %s24, 1
      %p47 = por %p45, %p46
      %p49 = scmp.ne.s32.totalorder %s32, %s48
      %p50 = scmp.eq.s32.totalorder %s24, 0
      %p51 = por %p49, %p50
      %s53 = sadd.s32 %s52, 1
      %p56 = scmp.eq.s32.totalorder %s18, 1
      %p57 = scmp.ne.s32.totalorder %s52, %s54
      %p58 = scmp.eq.s32.totalorder %s18, 0
      %p59 = por %p57, %p58
      %p60 = scmp.ne.s32.totalorder %s52, %s54
      %p61 = scmp.eq.s32.totalorder %s23, 1
      %p62 = por %p60, %p61
      %p63 = scmp.ne.s32.totalorder %s54, %s55
      %p64 = scmp.eq.s32.totalorder %s23, 0
      %p65 = por %p63, %p64
      %p66 = scmp.ne.s32.totalorder %s54, %s55
      %p67 = scmp.eq.s32.totalorder %s24, 1
      %p68 = por %p66, %p67
      %p70 = scmp.ne.s32.totalorder %s55, %s69
      %p71 = scmp.eq.s32.totalorder %s24, 0
      %p72 = por %p70, %p71
      %s74 = sadd.s32 %s73, 1
      %p77 = scmp.eq.s32.totalorder %s18, 1
      %p78 = scmp.ne.s32.totalorder %s73, %s75
      %p79 = scmp.eq.s32.totalorder %s18, 0
      %p80 = por %p78, %p79
      %p81 = scmp.ne.s32.totalorder %s73, %s75
      %p82 = scmp.eq.s32.totalorder %s23, 1
      %p83 = por %p81, %p82
      %p84 = scmp.ne.s32.totalorder %s75, %s76
      %p85 = scmp.eq.s32.totalorder %s23, 0
      %p86 = por %p84, %p85
      %p87 = scmp.ne.s32.totalorder %s75, %s76
      %p88 = scmp.eq.s32.totalorder %s24, 1
      %p89 = por %p87, %p88
      %p91 = scmp.ne.s32.totalorder %s76, %s90
      %p92 = scmp.eq.s32.totalorder %s24, 0
      %p93 = por %p91, %p92
      %s95 = sadd.s32 %s94, 1
      %p98 = scmp.eq.s32.totalorder %s18, 1
      %p99 = scmp.ne.s32.totalorder %s94, %s96
      %p100 = scmp.eq.s32.totalorder %s18, 0
      %p101 = por %p99, %p100
      %p102 = scmp.ne.s32.totalorder %s94, %s96
      %p103 = scmp.eq.s32.totalorder %s23, 1
      %p104 = por %p102, %p103
      %p105 = scmp.ne.s32.totalorder %s96, %s97
      %p106 = scmp.eq.s32.totalorder %s23, 0
      %p107 = por %p105, %p106
      %p108 = scmp.ne.s32.totalorder %s96, %s97
      %p109 = scmp.eq.s32.totalorder %s24, 1
      %p110 = por %p108, %p109
      %p112 = scmp.ne.s32.totalorder %s97, %s111
      %p113 = scmp.eq.s32.totalorder %s24, 0
      %p114 = por %p112, %p113
      %s116 = sadd.s32 %s115, 1
      %p119 = scmp.eq.s32.totalorder %s18, 1
      %p120 = scmp.ne.s32.totalorder %s115, %s117
      %p121 = scmp.eq.s32.totalorder %s18, 0
      %p122 = por %p120, %p121
      %p123 = scmp.ne.s32.totalorder %s115, %s117
      %p124 = scmp.eq.s32.totalorder %s23, 1
      %p125 = por %p123, %p124
      %p126 = scmp.ne.s32.totalorder %s117, %s118
      %p127 = scmp.eq.s32.totalorder %s23, 0
      %p128 = por %p126, %p127
      %p129 = scmp.ne.s32.totalorder %s117, %s118
      %p130 = scmp.eq.s32.totalorder %s24, 1
      %p131 = por %p129, %p130
      %p133 = scmp.ne.s32.totalorder %s118, %s132
      %p134 = scmp.eq.s32.totalorder %s24, 0
      %p135 = por %p133, %p134
      %s136 = ssub.s32 %s18, %s25
      %p137 = scmp.eq.s32.totalorder %s136, 0
      %s139 = sadd.s32 %s138, 1
      %s140 = scalar_select %p137, %s138, %s139
      %p143 = pneg %p137
      %p144 = scmp.eq.s32.totalorder %s18, 1
      %p145 = por %p143, %p144
      %p146 = scmp.ne.s32.totalorder %s138, %s141
      %p147 = scmp.eq.s32.totalorder %s18, 0
      %p148 = por %p146, %p147
      %p149 = scmp.ne.s32.totalorder %s138, %s141
      %p150 = scmp.eq.s32.totalorder %s23, 1
      %p151 = por %p149, %p150
      %p152 = scmp.ne.s32.totalorder %s141, %s142
      %p153 = scmp.eq.s32.totalorder %s23, 0
      %p154 = por %p152, %p153
      %p155 = scmp.ne.s32.totalorder %s141, %s142
      %p156 = scmp.eq.s32.totalorder %s24, 1
      %p157 = por %p155, %p156
      %p159 = scmp.ne.s32.totalorder %s142, %s158
      %p160 = scmp.eq.s32.totalorder %s24, 0
      %p161 = por %p159, %p160
      %p162 = scmp.le.s32.totalorder 1, %s18
      %p163 = scmp.lt.s32.totalorder %s18, 3
      %p164 = pnand %p162, %p163
      %p165 = pneg %p164
      // Predicated region
      $region9: #{tpu_custom_call.1} parent=5 // pred_check
        _
      $region10: #{tpu_custom_call.1} parent=5 // pred_check_branch
        %167 = sbr.rel (%p164) target = $region12
      $region11: #{tpu_custom_call.1} parent=5 // pred_region
        %s168 = ssub.s32 %s18, 1
        // Predicated region
        $region13: #{tpu_custom_call.1} parent=11 // pred_check
          %p169 = pneg %p65
        $region14: #{tpu_custom_call.1} parent=11 // pred_check_branch
          %171 = sbr.rel (%p169) target = $region16
        $region15: #{tpu_custom_call.1} parent=11 // pred_region
          %s173 = ssub.s32 512, 512
          %174 = vsyncadd [#allocation6], %s173
          %s175 = sshll.u32 [#allocation5], 4
          %s176 = int_to_ptr.vmem [resolvable:$true] %s175
          %181 = dma.hbm_to_vmem [thread:$0]  %s1, 512, %s176, [#allocation6], 128, 128, 8
        $region16: #{tpu_custom_call.1} parent=11 // pred_fallthru
          _
        // Predicated region
        $region17: #{tpu_custom_call.1} parent=11 // pred_check
          %p182 = pneg %p86
        $region18: #{tpu_custom_call.1} parent=11 // pred_check_branch
          %184 = sbr.rel (%p182) target = $region20
        $region19: #{tpu_custom_call.1} parent=11 // pred_region
          _
        $region20: #{tpu_custom_call.1} parent=11 // pred_fallthru
          _
        // Predicated region
        $region21: #{tpu_custom_call.1} parent=11 // pred_check
          %p185 = pneg %p107
        $region22: #{tpu_custom_call.1} parent=11 // pred_check_branch
          %187 = sbr.rel (%p185) target = $region24
        $region23: #{tpu_custom_call.1} parent=11 // pred_region
          %s189 = ssub.s32 512, 512
          %190 = vsyncadd [#allocation6], %s189
          %s191 = sshll.u32 [#allocation7], 4
          %s192 = int_to_ptr.vmem [resolvable:$true] %s191
          %197 = dma.hbm_to_vmem [thread:$0]  %s3, 512, %s192, [#allocation6], 128, 128, 8
        $region24: #{tpu_custom_call.1} parent=11 // pred_fallthru
          _
        // Predicated region
        $region25: #{tpu_custom_call.1} parent=11 // pred_check
          %p198 = pneg %p128
        $region26: #{tpu_custom_call.1} parent=11 // pred_check_branch
          %200 = sbr.rel (%p198) target = $region28
        $region27: #{tpu_custom_call.1} parent=11 // pred_region
          _
        $region28: #{tpu_custom_call.1} parent=11 // pred_fallthru
          _
      $region12: #{tpu_custom_call.1} parent=5 // pred_fallthru
        _
      %p201 = scmp.lt.s32.totalorder %s18, 2
      // Predicated region
      $region29: #{tpu_custom_call.1} parent=5 // pred_check
        %p202 = pneg %p201
      $region30: #{tpu_custom_call.1} parent=5 // pred_check_branch
        %204 = sbr.rel (%p202) target = $region32
      $region31: #{tpu_custom_call.1} parent=5 // pred_region
        // Predicated region
        $region33: #{tpu_custom_call.1} parent=31 // pred_check
          %p205 = pneg %p38
        $region34: #{tpu_custom_call.1} parent=31 // pred_check_branch
          %207 = sbr.rel (%p205) target = $region36
        $region35: #{tpu_custom_call.1} parent=31 // pred_region
          %s208 = sand.u32 %s28, 1
          %s209 = scalar_lea.sflag [#allocation3], %s208
          %s210 = sand.u32 %s28, 1
          %s211 = smul.addr %s210, 16
          %s212 = scalar_lea.vmem [#allocation2], %s211
          %s213 = smul.u32 2, %s18
          %s214 = ssub.s32 3, %s213
          %p215 = scmp.lt.s32.totalorder %s214, 2
          %s216 = scalar_select %p215, %s214, 2
          %s217 = smul.u32 128, %s216
          %s219 = ssub.s32 256, %s217
          %220 = vsyncadd %s209, %s219
          %p221 = scmp.ne.s32.totalorder 0, %s217
          %s222 = smul.addr %s213, 128
          %s223 = scalar_lea.hbm %s0, %s222
          %s224 = smul.u32 8, %s216
          %s225 = sshll.u32 %s212, 4
          %s226 = int_to_ptr.vmem [resolvable:$true] %s225
          %s227 = sshll.u32 %s224, 4
          %231 = dma.hbm_to_vmem [thread:$0]  (%p221), %s223, %s227, %s226, %s209, 128, 128, 8
        $region36: #{tpu_custom_call.1} parent=31 // pred_fallthru
          _
      $region32: #{tpu_custom_call.1} parent=5 // pred_fallthru
        _
      %p232 = scmp.le.s32.totalorder 1, %s18
      %p233 = scmp.lt.s32.totalorder %s18, 3
      %p234 = pnand %p232, %p233
      %p235 = pneg %p234
      // Predicated region
      $region37: #{tpu_custom_call.1} parent=5 // pred_check
        _
      $region38: #{tpu_custom_call.1} parent=5 // pred_check_branch
        %237 = sbr.rel (%p234) target = $region40
      $region39: #{tpu_custom_call.1} parent=5 // pred_region
        %s238 = ssub.s32 %s18, 1
        %s239 = sand.u32 %s31, 1
        %s240 = scalar_lea.sflag [#allocation3], %s239
        %s241 = sand.u32 %s31, 1
        %s242 = smul.addr %s241, 16
        %s243 = scalar_lea.vmem [#allocation2], %s242
        // Predicated region
        $region41: #{tpu_custom_call.1} parent=39 // pred_check
          %p244 = pneg %p44
        $region42: #{tpu_custom_call.1} parent=39 // pred_check_branch
          %246 = sbr.rel (%p244) target = $region44
        $region43: #{tpu_custom_call.1} parent=39 // pred_region
          %247 = dma.done %s240, 256
        $region44: #{tpu_custom_call.1} parent=39 // pred_fallthru
          _
        // Predicated region
        $region45: #{tpu_custom_call.1} parent=39 // pred_check
          %p248 = pneg %p65
        $region46: #{tpu_custom_call.1} parent=39 // pred_check_branch
          %250 = sbr.rel (%p248) target = $region48
        $region47: #{tpu_custom_call.1} parent=39 // pred_region
          %251 = dma.done [#allocation6], 512
        $region48: #{tpu_custom_call.1} parent=39 // pred_fallthru
          _
        // Predicated region
        $region49: #{tpu_custom_call.1} parent=39 // pred_check
          %p252 = pneg %p107
        $region50: #{tpu_custom_call.1} parent=39 // pred_check_branch
          %254 = sbr.rel (%p252) target = $region52
        $region51: #{tpu_custom_call.1} parent=39 // pred_region
          %255 = dma.done [#allocation6], 512
        $region52: #{tpu_custom_call.1} parent=39 // pred_fallthru
          _
        %s256 = sand.u32 %s31, 1
        %s257 = scalar_lea.sflag [#allocation3], %s256
        %s258 = sand.u32 %s31, 1
        %s259 = smul.addr %s258, 16
        %s260 = scalar_lea.vmem [#allocation2], %s259
        %p261 = pneg %p44
        %p262 = pneg %p41
        %p263 = pneg %p65
        %p264 = pneg %p62
        %p265 = pneg %p86
        %p266 = pneg %p83
        %p267 = pneg %p107
        %p268 = pneg %p104
        %p269 = pneg %p128
        %p270 = pneg %p125
        %p271 = pneg %p154
        %p272 = pneg %p151
        %s273 = sand.u32 %s141, 1
        %s274 = scalar_lea.sflag [#allocation4], %s273
        %s275 = sand.u32 %s141, 1
        %s276 = smul.addr %s275, 16
        %s277 = scalar_lea.vmem [#allocation8], %s276
        %s278 = smul.u32 2, %s23
        %s279 = ssub.s32 3, %s278
        %p280 = scmp.lt.s32.totalorder %s279, 2
        %s281 = scalar_select %p280, %s279, 2
        %s282 = smul.u32 128, %s281
        %s283 = smul.u32 2, %s23
        %s284 = ssub.s32 3, %s283
        %p285 = scmp.lt.s32.totalorder %s284, 2
        %s286 = scalar_select %p285, %s284, 2
        %s287 = smul.u32 128, %s286
        %v288 = vld [vmem:[%s243] sm:$0xff]
        %v289 = vld [vmem:[%s243 + $0x8] sm:$0xff]
        %v290 = vld [vmem:[#allocation5] sm:$0xff]
        %v291 = vld [vmem:[#allocation5 + $0x8] sm:$0xff]
        %v292 = vld [vmem:[#allocation5 + $0x10] sm:$0xff]
        %v293 = vld [vmem:[#allocation5 + $0x18] sm:$0xff]
        %v294 = vld [vmem:[%s2] sm:$0x1]
        %v296 = vlaneseq
        %v297 = vshrl.u32 %v296, 7
        %v298 = vsub.s32 0, %v297
        %v299 = vrot.slane %v294, %v298
        %vm301 = vcmask 261120
        %v303 = vsel %vm301, %v288, 0
        %v306 = vsel %vm301, %v289, 0
        %308 = vmatprep.subr.mxu0 0.0
        %309 = vmatpush1.msra.mxu0 %v290
        %310 = vmatprep.subr.mxu0 0.0
        %311 = vmatpush1.msra.mxu0 %v291
        %312 = vmatprep.subr.mxu0 0.0
        %313 = vmatpush1.msra.mxu0 %v292
        %314 = vmatprep.subr.mxu0 0.0
        %315 = vmatpush1.msra.mxu0 %v293
        %316 = vmatprep.subr.mxu0 0.0
        %317 = vmatpush1.msra.mxu0 0.0
        %318 = vmatprep.subr.mxu0 0.0
        %319 = vmatpush1.msra.mxu0 0.0
        %320 = vmatprep.subr.mxu0 0.0
        %321 = vmatpush1.msra.mxu0 0.0
        %322 = vmatprep.subr.mxu0 0.0
        %323 = vmatpush1.msra.mxu0 0.0
        %324 = vmatprep.subr.mxu0 0.0
        %325 = vmatpush1.msra.mxu0 0.0
        %326 = vmatprep.subr.mxu0 0.0
        %327 = vmatpush1.msra.mxu0 0.0
        %328 = vmatprep.subr.mxu0 0.0
        %329 = vmatpush1.msra.mxu0 0.0
        %330 = vmatprep.subr.mxu0 0.0
        %331 = vmatpush1.msra.mxu0 0.0
        %332 = vmatprep.subr.mxu0 0.0
        %333 = vmatpush1.msra.mxu0 0.0
        %334 = vmatprep.subr.mxu0 0.0
        %335 = vmatpush1.msra.mxu0 0.0
        %336 = vmatprep.subr.mxu0 0.0
        %337 = vmatpush1.msra.mxu0 0.0
        %338 = vmatprep.subr.mxu0 0.0
        %339 = vmatpush1.msra.mxu0 0.0
        %340 = vmatprep.subr.mxu0 0.0
        %341 = vmatpush1.msra.mxu0 0.0
        %342 = vmatprep.subr.mxu0 0.0
        %343 = vmatpush1.msra.mxu0 0.0
        %344 = vmatprep.subr.mxu0 0.0
        %345 = vmatpush1.msra.mxu0 0.0
        %346 = vmatprep.subr.mxu0 0.0
        %347 = vmatpush1.msra.mxu0 0.0
        %348 = vmatprep.subr.mxu0 0.0
        %349 = vmatpush1.msra.mxu0 0.0
        %350 = vmatprep.subr.mxu0 0.0
        %351 = vmatpush1.msra.mxu0 0.0
        %352 = vmatprep.subr.mxu0 0.0
        %353 = vmatpush1.msra.mxu0 0.0
        %354 = vmatprep.subr.mxu0 0.0
        %355 = vmatpush1.msra.mxu0 0.0
        %356 = vmatprep.subr.mxu0 0.0
        %357 = vmatpush1.msra.mxu0 0.0
        %358 = vmatprep.subr.mxu0 0.0
        %359 = vmatpush1.msra.mxu0 0.0
        %360 = vmatprep.subr.mxu0 0.0
        %361 = vmatpush1.msra.mxu0 0.0
        %362 = vmatprep.subr.mxu0 0.0
        %363 = vmatpush1.msra.mxu0 0.0
        %364 = vmatprep.subr.mxu0 0.0
        %365 = vmatpush1.msra.mxu0 0.0
        %366 = vmatprep.subr.mxu0 0.0
        %367 = vmatpush1.msra.mxu0 0.0
        %368 = vmatprep.subr.mxu0 0.0
        %369 = vmatpush1.msra.mxu0 0.0
        %370 = vmatprep.subr.mxu0 0.0
        %371 = vmatpush1.msra.mxu0 0.0
        %372 = vmatprep.mubr.f32.mxu0 0.0
        %373 = vmatmul.mubr.f32.gmra.mrb[0].mxu0 %v303
        %v374 = vpop.f32.mrb[0].mxu0
        %v375 = vadd.f32 %v299, %v374
        %v376 = vpop.f32.mrb[0].mxu0
        %377 = vmatprep.mubr.f32.mxu0 0.0
        %378 = vmatmul.mubr.f32.gmra.mrb[0].mxu0 %v306
        %v379 = vpop.f32.mrb[0].mxu0
        %v380 = vadd.f32 %v299, %v379
        %v381 = vpop.f32.mrb[0].mxu0
        %382 = vdwg.mxu0
        %v383 = vtanh.pop %v375
        %v384 = vtanh.pop %v380
        %v385 = vld [vmem:[#allocation7] sm:$0xff]
        %v386 = vld [vmem:[#allocation7 + $0x8] sm:$0xff]
        %v387 = vld [vmem:[#allocation7 + $0x10] sm:$0xff]
        %v388 = vld [vmem:[#allocation7 + $0x18] sm:$0xff]
        %v389 = vld [vmem:[%s4] sm:$0x1]
        %v391 = vlaneseq
        %v392 = vshrl.u32 %v391, 7
        %v393 = vsub.s32 0, %v392
        %v394 = vrot.slane %v389, %v393
        %v397 = vsel %vm301, %v383, 0
        %v400 = vsel %vm301, %v384, 0
        %402 = vmatprep.subr.mxu0 0.0
        %403 = vmatpush1.msra.mxu0 %v385
        %404 = vmatprep.subr.mxu0 0.0
        %405 = vmatpush1.msra.mxu0 %v386
        %406 = vmatprep.subr.mxu0 0.0
        %407 = vmatpush1.msra.mxu0 %v387
        %408 = vmatprep.subr.mxu0 0.0
        %409 = vmatpush1.msra.mxu0 %v388
        %410 = vmatprep.subr.mxu0 0.0
        %411 = vmatpush1.msra.mxu0 0.0
        %412 = vmatprep.subr.mxu0 0.0
        %413 = vmatpush1.msra.mxu0 0.0
        %414 = vmatprep.subr.mxu0 0.0
        %415 = vmatpush1.msra.mxu0 0.0
        %416 = vmatprep.subr.mxu0 0.0
        %417 = vmatpush1.msra.mxu0 0.0
        %418 = vmatprep.subr.mxu0 0.0
        %419 = vmatpush1.msra.mxu0 0.0
        %420 = vmatprep.subr.mxu0 0.0
        %421 = vmatpush1.msra.mxu0 0.0
        %422 = vmatprep.subr.mxu0 0.0
        %423 = vmatpush1.msra.mxu0 0.0
        %424 = vmatprep.subr.mxu0 0.0
        %425 = vmatpush1.msra.mxu0 0.0
        %426 = vmatprep.subr.mxu0 0.0
        %427 = vmatpush1.msra.mxu0 0.0
        %428 = vmatprep.subr.mxu0 0.0
        %429 = vmatpush1.msra.mxu0 0.0
        %430 = vmatprep.subr.mxu0 0.0
        %431 = vmatpush1.msra.mxu0 0.0
        %432 = vmatprep.subr.mxu0 0.0
        %433 = vmatpush1.msra.mxu0 0.0
        %434 = vmatprep.subr.mxu0 0.0
        %435 = vmatpush1.msra.mxu0 0.0
        %436 = vmatprep.subr.mxu0 0.0
        %437 = vmatpush1.msra.mxu0 0.0
        %438 = vmatprep.subr.mxu0 0.0
        %439 = vmatpush1.msra.mxu0 0.0
        %440 = vmatprep.subr.mxu0 0.0
        %441 = vmatpush1.msra.mxu0 0.0
        %442 = vmatprep.subr.mxu0 0.0
        %443 = vmatpush1.msra.mxu0 0.0
        %444 = vmatprep.subr.mxu0 0.0
        %445 = vmatpush1.msra.mxu0 0.0
        %446 = vmatprep.subr.mxu0 0.0
        %447 = vmatpush1.msra.mxu0 0.0
        %448 = vmatprep.subr.mxu0 0.0
        %449 = vmatpush1.msra.mxu0 0.0
        %450 = vmatprep.subr.mxu0 0.0
        %451 = vmatpush1.msra.mxu0 0.0
        %452 = vmatprep.subr.mxu0 0.0
        %453 = vmatpush1.msra.mxu0 0.0
        %454 = vmatprep.subr.mxu0 0.0
        %455 = vmatpush1.msra.mxu0 0.0
        %456 = vmatprep.subr.mxu0 0.0
        %457 = vmatpush1.msra.mxu0 0.0
        %458 = vmatprep.subr.mxu0 0.0
        %459 = vmatpush1.msra.mxu0 0.0
        %460 = vmatprep.subr.mxu0 0.0
        %461 = vmatpush1.msra.mxu0 0.0
        %462 = vmatprep.subr.mxu0 0.0
        %463 = vmatpush1.msra.mxu0 0.0
        %464 = vmatprep.subr.mxu0 0.0
        %465 = vmatpush1.msra.mxu0 0.0
        %466 = vmatprep.mubr.f32.mxu0 0.0
        %467 = vmatmul.mubr.f32.gmra.mrb[0].mxu0 %v397
        %v468 = vpop.f32.mrb[0].mxu0
        %v469 = vadd.f32 %v394, %v468
        %v470 = vpop.f32.mrb[0].mxu0
        %471 = vmatprep.mubr.f32.mxu0 0.0
        %472 = vmatmul.mubr.f32.gmra.mrb[0].mxu0 %v400
        %v473 = vpop.f32.mrb[0].mxu0
        %v474 = vadd.f32 %v394, %v473
        %v475 = vpop.f32.mrb[0].mxu0
        %476 = vdwg.mxu0
        %477 = vst [vmem:[%s277] sm:$0xff] %v469
        %478 = vst [vmem:[%s277 + $0x8] sm:$0xff] %v474
        %s479 = sand.u32 %s141, 1
        %s480 = scalar_lea.sflag [#allocation4], %s479
        %s481 = sand.u32 %s141, 1
        %s482 = smul.addr %s481, 16
        %s483 = scalar_lea.vmem [#allocation8], %s482
        // Predicated region
        $region53: #{tpu_custom_call.1} parent=39 // pred_check
          %p484 = pneg %p151
        $region54: #{tpu_custom_call.1} parent=39 // pred_check_branch
          %486 = sbr.rel (%p484) target = $region56
        $region55: #{tpu_custom_call.1} parent=39 // pred_region
          %s487 = smul.u32 2, %s23
          %s488 = ssub.s32 3, %s487
          %p489 = scmp.lt.s32.totalorder %s488, 2
          %s490 = scalar_select %p489, %s488, 2
          %s491 = smul.u32 128, %s490
          %s493 = ssub.s32 256, %s491
          %494 = vsyncadd %s480, %s493
          %p495 = scmp.ne.s32.totalorder 0, %s491
          %s496 = smul.addr %s487, 128
          %s497 = scalar_lea.hbm %s5, %s496
          %s498 = smul.u32 8, %s490
          %s499 = sshll.u32 %s483, 4
          %s500 = int_to_ptr.vmem [resolvable:$true] %s499
          %s501 = sshll.u32 %s498, 4
          %505 = dma.vmem_to_hbm [thread:$0]  (%p495), %s500, %s501, %s497, %s480, 128, 128, 8
        $region56: #{tpu_custom_call.1} parent=39 // pred_fallthru
          _
      $region40: #{tpu_custom_call.1} parent=5 // pred_fallthru
        _
      %p506 = scmp.le.s32.totalorder 2, %s18
      // Predicated region
      $region57: #{tpu_custom_call.1} parent=5 // pred_check
        %p507 = pneg %p506
      $region58: #{tpu_custom_call.1} parent=5 // pred_check_branch
        %509 = sbr.rel (%p507) target = $region60
      $region59: #{tpu_custom_call.1} parent=5 // pred_region
        %s510 = ssub.s32 %s18, 2
        // Predicated region
        $region61: #{tpu_custom_call.1} parent=59 // pred_check
          %p511 = pneg %p157
        $region62: #{tpu_custom_call.1} parent=59 // pred_check_branch
          %513 = sbr.rel (%p511) target = $region64
        $region63: #{tpu_custom_call.1} parent=59 // pred_region
          %s514 = sand.u32 %s142, 1
          %s515 = scalar_lea.sflag [#allocation4], %s514
          %s516 = sand.u32 %s142, 1
          %s517 = smul.addr %s516, 16
          %s518 = scalar_lea.vmem [#allocation8], %s517
          %519 = dma.done %s515, 256
        $region64: #{tpu_custom_call.1} parent=59 // pred_fallthru
          _
      $region60: #{tpu_custom_call.1} parent=5 // pred_fallthru
        _
    $region6: #{tpu_custom_call.1} parent=1 // loop_footer
      %s22 = sadd.s32 1, %s18
    $region7: #{tpu_custom_call.1} parent=1 // loop_footer_branch
      %17 = sbr.rel target = $region3
    $region8: #{tpu_custom_call.1} parent=1 // loop_exit
      _
    %520 = vsyncpa [#allocation3], 1
    %s521 = scalar_lea.sflag [#allocation3], 1
    %522 = vsyncpa %s521, 1
    %523 = vsyncpa [#allocation6], 1
    %524 = vsyncpa [#allocation4], 1
    %s525 = scalar_lea.sflag [#allocation4], 1
    %526 = vsyncpa %s525, 1

</llo_original>
